<compile_context>
chip_gen: v7x
topology: tpu7x:2x2x1
jax: 0.10.0
libtpu: 0.0.40
codegen_flags: <defaults>
</compile_context>

<pallas_src>
import jax
import jax.numpy as jnp
from jax.experimental import pallas as pl
from jax.experimental.pallas import tpu as pltpu

ASPECTS = (
    "quality",
    "engagement",
    "educational_value",
    "age_appropriateness",
    "difficulty_match",
)

_LANE = 128


def _round_up(x, m):
    return ((x + m - 1) // m) * m


def _cdiv(a, b):
    return -(-a // b)


def _plan_batch(batch, block_b):
    """Pick (tile_rows, padded_batch, grid) with minimal padding waste.

    - pad only to a multiple of 16 rows (bf16 sublane packing), never a full tile
    - split into >= 2 tiles when the batch is large enough, so v7x megacore
      ("parallel" batch axis) keeps both TensorCores busy
    - cap the tile at block_b (default 2048: ~16 MiB of VMEM incl. f32 CLS
      double-buffering, fits every generation once vmem_limit_bytes is raised)
    """
    b_base = _round_up(batch, 16)
    grid = max(1, _cdiv(b_base, block_b))
    if grid == 1 and b_base >= 512:
        grid = 2
    tb = _round_up(_cdiv(b_base, grid), 16)
    b_pad = tb * grid
    return tb, b_pad, grid


def _reward_kernel(cls_ref, wp_ref, bp_ref, wh_ref, bh_ref, out_ref):
    # CLS arrives f32 (no wrapper-side cast pass); cast to bf16 in VMEM (VPU op).
    cls = cls_ref[...].astype(wp_ref.dtype)
    # pooled = tanh(cls @ W_pool + b_pool)  (BERT pooler) — bf16 MXU, f32 accumulate.
    pooled = jnp.tanh(
        jnp.dot(cls, wp_ref[...], preferred_element_type=jnp.float32) + bp_ref[...]
    )
    # scores = pooled @ W_heads + b_heads   (5 Linear(768,1) heads fused; N padded to 128).
    scores = (
        jnp.dot(pooled.astype(wh_ref.dtype), wh_ref[...],
                preferred_element_type=jnp.float32)
        + bh_ref[...]
    )
    out_ref[...] = scores.astype(out_ref.dtype)  # bf16 lane-dense store


def prepare_reward_params(w_pool, b_pool, w_heads, b_heads):
    """One-time parameter prep: bf16 weights, f32 biases, head dim padded to 128.

    Do this once at model-load time, NOT per forward call (avoids re-reading /
    re-writing the 768x768 pooler weight in HBM on every call).
    """
    n_heads = w_heads.shape[1]
    n_pad = _round_up(max(n_heads, _LANE), _LANE)  # exactly 128 for 5 heads
    return {
        "wp": w_pool.astype(jnp.bfloat16),                                   # [H, H]
        "bp": b_pool.reshape(1, -1).astype(jnp.float32),                     # [1, H]
        "wh": jnp.pad(w_heads, ((0, 0), (0, n_pad - n_heads))).astype(jnp.bfloat16),  # [H, 128]
        "bh": jnp.pad(b_heads.reshape(1, -1),
                      ((0, 0), (0, n_pad - n_heads))).astype(jnp.float32),   # [1, 128]
        "n_heads": n_heads,
    }


def _build_call(tb, b_pad, H, n_pad, grid_b, cost, vmem_limit, single_buffer_weights):
    # Resident (constant index_map) params: request single buffering so Pallas
    # doesn't allocate a second, never-used VMEM copy of the weights.
    resident = (
        dict(pipeline_mode=pl.Buffered(1)) if single_buffer_weights else {}
    )
    return pl.pallas_call(
        _reward_kernel,
        out_shape=jax.ShapeDtypeStruct((b_pad, n_pad), jnp.bfloat16),
        grid=(grid_b,),
        in_specs=[
            pl.BlockSpec((tb, H), lambda i: (i, 0)),                 # CLS tiles: pipelined over batch
            pl.BlockSpec((H, H), lambda i: (0, 0), **resident),      # pooler weight: resident
            pl.BlockSpec((1, H), lambda i: (0, 0), **resident),      # pooler bias:   resident
            pl.BlockSpec((H, n_pad), lambda i: (0, 0), **resident),  # stacked head weights: resident
            pl.BlockSpec((1, n_pad), lambda i: (0, 0), **resident),  # stacked head biases:  resident
        ],
        out_specs=pl.BlockSpec((tb, n_pad), lambda i: (i, 0)),
        compiler_params=pltpu.CompilerParams(
            # Batch tiles are independent -> shard across TCs on v7x megacore.
            dimension_semantics=("parallel",),
            vmem_limit_bytes=vmem_limit,
        ),
        cost_estimate=cost,
    )


def reward_model_forward(cls_hidden, params, *, block_b=2048):
    """cls_hidden: [B, H] f32 CLS hidden states. Returns dict aspect -> [B, 1] f32."""
    B, H = cls_hidden.shape
    wp, bp, wh, bh = params["wp"], params["bp"], params["wh"], params["bh"]
    n_heads = params["n_heads"]
    n_pad = wh.shape[1]

    tb, b_pad, grid_b = _plan_batch(B, block_b)

    # Keep activations f32 (cast happens inside the kernel); pad batch only if needed.
    cls_p = cls_hidden if b_pad == B else jnp.pad(cls_hidden, ((0, b_pad - B), (0, 0)))

    cost = pl.CostEstimate(
        flops=2 * b_pad * H * H + 2 * b_pad * H * n_pad,
        transcendentals=b_pad * H,
        bytes_accessed=(b_pad * H * 4          # f32 CLS in
                        + wp.size * 2 + wh.size * 2
                        + bp.size * 4 + bh.size * 4
                        + b_pad * n_pad * 2),  # bf16 scores out
    )

    # Scoped-VMEM budget: f32 CLS tiles (x2 buffers) + bf16 out tiles (x2) +
    # weights (worst case x2). Raised above v5e's 16 MiB default; far below
    # every generation's physical VMEM.
    vmem_need = (2 * tb * H * 4 + 2 * tb * n_pad * 2
                 + 2 * (H * H * 2 + H * n_pad * 2 + H * 4 + n_pad * 4))
    vmem_limit = min(max(vmem_need + (4 << 20), 24 << 20), 48 << 20)

    try:
        scores_padded = _build_call(
            tb, b_pad, H, n_pad, grid_b, cost, vmem_limit,
            single_buffer_weights=True,
        )(cls_p, wp, bp, wh, bh)
    except Exception:
        # TODO(synk): pl.Buffered(1) single-buffered resident weights is not
        # supported on every jax release; fall back to default double-buffering.
        scores_padded = _build_call(
            tb, b_pad, H, n_pad, grid_b, cost, vmem_limit,
            single_buffer_weights=False,
        )(cls_p, wp, bp, wh, bh)

    # Single crop to a contiguous (B, n_heads) f32 array, then cheap column views.
    scores = scores_padded[:B, :n_heads].astype(jnp.float32)
    return {aspect: scores[:, i: i + 1] for i, aspect in enumerate(ASPECTS)}


def _reference(cls_hidden, w_pool, b_pool, w_heads, b_heads):
    pooled = jnp.tanh(cls_hidden @ w_pool + b_pool)
    scores = pooled @ w_heads + b_heads
    return {a: scores[:, i: i + 1] for i, a in enumerate(ASPECTS)}


if __name__ == "__main__":
    # Small shapes consistent with the module (hidden=768 in BERT -> 32 here).
    B, S, H = 2, 8, 32
    n_heads = len(ASPECTS)

    key = jax.random.PRNGKey(0)
    k_hs, k_wp, k_bp, k_wh, k_bh = jax.random.split(key, 5)

    # Synthetic "BERT" last_hidden_state; the pooler consumes the CLS (position 0) token.
    hidden_states = jax.random.normal(k_hs, (B, S, H), dtype=jnp.float32)
    cls_hidden = hidden_states[:, 0, :]  # [B, H]

    # Deterministic parameter init (pooler: Linear(H, H); heads: 5 x Linear(H, 1)).
    w_pool = jax.random.normal(k_wp, (H, H), dtype=jnp.float32) * 0.02
    b_pool = jax.random.normal(k_bp, (1, H), dtype=jnp.float32) * 0.02
    w_heads = jax.random.normal(k_wh, (H, n_heads), dtype=jnp.float32) * 0.02
    b_heads = jax.random.normal(k_bh, (1, n_heads), dtype=jnp.float32) * 0.02

    # Parameters prepared once (cast/pad outside the per-forward path).
    params = prepare_reward_params(w_pool, b_pool, w_heads, b_heads)

    out = reward_model_forward(cls_hidden, params)
    out = jax.tree_util.tree_map(jax.block_until_ready, out)

    ref = _reference(cls_hidden, w_pool, b_pool, w_heads, b_heads)
    for aspect in ASPECTS:
        assert out[aspect].shape == (B, 1), (aspect, out[aspect].shape)
        # bf16 matmuls / bf16 writeback with f32 accumulation -> loosened tolerance.
        assert jnp.allclose(out[aspect], ref[aspect], atol=5e-3, rtol=5e-2), aspect

    print("KERNEL_OK")
</pallas_src>

<mosaic_0001>
module attributes {stable_mosaic.version = 11 : i64} {
  func.func @_reward_kernel(%arg0: i32, %arg1: memref<16x32xf32, #tpu.memory_space<vmem>>, %arg2: memref<32x32xbf16, #tpu.memory_space<vmem>>, %arg3: memref<1x32xf32, #tpu.memory_space<vmem>>, %arg4: memref<32x128xbf16, #tpu.memory_space<vmem>>, %arg5: memref<1x128xf32, #tpu.memory_space<vmem>>, %arg6: memref<16x128xbf16, #tpu.memory_space<vmem>>) attributes {dimension_semantics = [#tpu.dimension_semantics<parallel>], iteration_bounds = array<i64: 1>, scalar_prefetch = 0 : i64, scratch_operands = 0 : i64, tpu.core_type = #tpu.core_type<tc>, window_params = [{transform_indices = @transform_0, window_bounds = array<i64: 16, 32>}, {pipeline_mode = #tpu.pipeline_mode<synchronous>, transform_indices = @transform_1, window_bounds = array<i64: 32, 32>}, {pipeline_mode = #tpu.pipeline_mode<synchronous>, transform_indices = @transform_2, window_bounds = array<i64: 1, 32>}, {pipeline_mode = #tpu.pipeline_mode<synchronous>, transform_indices = @transform_3, window_bounds = array<i64: 32, 128>}, {pipeline_mode = #tpu.pipeline_mode<synchronous>, transform_indices = @transform_4, window_bounds = array<i64: 1, 128>}, {transform_indices = @transform_5, window_bounds = array<i64: 16, 128>}]} {
    %c0 = arith.constant 0 : index
    %c0_0 = arith.constant 0 : index
    %0 = vector.load %arg1[%c0, %c0_0] : memref<16x32xf32, #tpu.memory_space<vmem>>, vector<16x32xf32>
    %1 = arith.truncf %0 : vector<16x32xf32> to vector<16x32xbf16>
    %c0_1 = arith.constant 0 : index
    %c0_2 = arith.constant 0 : index
    %2 = vector.load %arg2[%c0_1, %c0_2] : memref<32x32xbf16, #tpu.memory_space<vmem>>, vector<32x32xbf16>
    %cst = arith.constant dense<0.000000e+00> : vector<16x32xf32>
    %3 = tpu.matmul %1, %2, %cst {dimension_numbers = #tpu.dot_dimension_numbers<[1], [0], [0], [1], [0, 0, 1, 1], [], []>} : vector<16x32xbf16>, vector<32x32xbf16>, vector<16x32xf32> -> vector<16x32xf32>
    %c0_3 = arith.constant 0 : index
    %c0_4 = arith.constant 0 : index
    %4 = vector.load %arg3[%c0_3, %c0_4] : memref<1x32xf32, #tpu.memory_space<vmem>>, vector<1x32xf32>
    %5 = vector.broadcast %4 : vector<1x32xf32> to vector<16x32xf32>
    %6 = arith.addf %3, %5 : vector<16x32xf32>
    %7 = math.tanh %6 : vector<16x32xf32>
    %8 = arith.truncf %7 : vector<16x32xf32> to vector<16x32xbf16>
    %c0_5 = arith.constant 0 : index
    %c0_6 = arith.constant 0 : index
    %9 = vector.load %arg4[%c0_5, %c0_6] : memref<32x128xbf16, #tpu.memory_space<vmem>>, vector<32x128xbf16>
    %cst_7 = arith.constant dense<0.000000e+00> : vector<16x128xf32>
    %10 = tpu.matmul %8, %9, %cst_7 {dimension_numbers = #tpu.dot_dimension_numbers<[1], [0], [0], [1], [0, 0, 1, 1], [], []>} : vector<16x32xbf16>, vector<32x128xbf16>, vector<16x128xf32> -> vector<16x128xf32>
    %c0_8 = arith.constant 0 : index
    %c0_9 = arith.constant 0 : index
    %11 = vector.load %arg5[%c0_8, %c0_9] : memref<1x128xf32, #tpu.memory_space<vmem>>, vector<1x128xf32>
    %12 = vector.broadcast %11 : vector<1x128xf32> to vector<16x128xf32>
    %13 = arith.addf %10, %12 : vector<16x128xf32>
    %14 = arith.truncf %13 : vector<16x128xf32> to vector<16x128xbf16>
    %c0_10 = arith.constant 0 : index
    %c0_11 = arith.constant 0 : index
    %15 = vector.load %arg6[%c0_10, %c0_11] : memref<16x128xbf16, #tpu.memory_space<vmem>>, vector<16x128xbf16>
    tpu.vector_store %arg6[%c0_10, %c0_11], %14 {strides = array<i32>} : memref<16x128xbf16, #tpu.memory_space<vmem>>, vector<16x128xbf16>,
    return
  }
  func.func @transform_0(%arg0: i32) -> (i32, i32) {
    %c0_i32 = arith.constant 0 : i32
    %c0_i32_0 = arith.constant 0 : i32
    return %arg0, %c0_i32 : i32, i32
  }
  func.func @transform_1(%arg0: i32) -> (i32, i32) {
    %c0_i32 = arith.constant 0 : i32
    %c0_i32_0 = arith.constant 0 : i32
    %c0_i32_1 = arith.constant 0 : i32
    return %c0_i32, %c0_i32_0 : i32, i32
  }
  func.func @transform_2(%arg0: i32) -> (i32, i32) {
    %c0_i32 = arith.constant 0 : i32
    %c0_i32_0 = arith.constant 0 : i32
    %c0_i32_1 = arith.constant 0 : i32
    return %c0_i32, %c0_i32_0 : i32, i32
  }
  func.func @transform_3(%arg0: i32) -> (i32, i32) {
    %c0_i32 = arith.constant 0 : i32
    %c0_i32_0 = arith.constant 0 : i32
    %c0_i32_1 = arith.constant 0 : i32
    return %c0_i32, %c0_i32_0 : i32, i32
  }
  func.func @transform_4(%arg0: i32) -> (i32, i32) {
    %c0_i32 = arith.constant 0 : i32
    %c0_i32_0 = arith.constant 0 : i32
    %c0_i32_1 = arith.constant 0 : i32
    return %c0_i32, %c0_i32_0 : i32, i32
  }
  func.func @transform_5(%arg0: i32) -> (i32, i32) {
    %c0_i32 = arith.constant 0 : i32
    %c0_i32_0 = arith.constant 0 : i32
    return %arg0, %c0_i32 : i32, i32
  }
}

module attributes {stable_mosaic.version = 11 : i64} {
  func.func @_reward_kernel(%arg0: i32, %arg1: memref<16x32xf32, #tpu.memory_space<vmem>>, %arg2: memref<32x32xbf16, #tpu.memory_space<vmem>>, %arg3: memref<1x32xf32, #tpu.memory_space<vmem>>, %arg4: memref<32x128xbf16, #tpu.memory_space<vmem>>, %arg5: memref<1x128xf32, #tpu.memory_space<vmem>>, %arg6: memref<16x128xbf16, #tpu.memory_space<vmem>>) attributes {dimension_semantics = [#tpu.dimension_semantics<parallel>], iteration_bounds = array<i64: 1>, scalar_prefetch = 0 : i64, scratch_operands = 0 : i64, tpu.core_type = #tpu.core_type<tc>, window_params = [{transform_indices = @transform_0, window_bounds = array<i64: 16, 32>}, {pipeline_mode = #tpu.pipeline_mode<synchronous>, transform_indices = @transform_1, window_bounds = array<i64: 32, 32>}, {pipeline_mode = #tpu.pipeline_mode<synchronous>, transform_indices = @transform_2, window_bounds = array<i64: 1, 32>}, {pipeline_mode = #tpu.pipeline_mode<synchronous>, transform_indices = @transform_3, window_bounds = array<i64: 32, 128>}, {pipeline_mode = #tpu.pipeline_mode<synchronous>, transform_indices = @transform_4, window_bounds = array<i64: 1, 128>}, {transform_indices = @transform_5, window_bounds = array<i64: 16, 128>}]} {
    %c0 = arith.constant 0 : index
    %c0_0 = arith.constant 0 : index
    %0 = vector.load %arg1[%c0, %c0_0] : memref<16x32xf32, #tpu.memory_space<vmem>>, vector<16x32xf32>
    %1 = arith.truncf %0 : vector<16x32xf32> to vector<16x32xbf16>
    %c0_1 = arith.constant 0 : index
    %c0_2 = arith.constant 0 : index
    %2 = vector.load %arg2[%c0_1, %c0_2] : memref<32x32xbf16, #tpu.memory_space<vmem>>, vector<32x32xbf16>
    %cst = arith.constant dense<0.000000e+00> : vector<16x32xf32>
    %3 = tpu.matmul %1, %2, %cst {dimension_numbers = #tpu.dot_dimension_numbers<[1], [0], [0], [1], [0, 0, 1, 1], [], []>} : vector<16x32xbf16>, vector<32x32xbf16>, vector<16x32xf32> -> vector<16x32xf32>
    %c0_3 = arith.constant 0 : index
    %c0_4 = arith.constant 0 : index
    %4 = vector.load %arg3[%c0_3, %c0_4] : memref<1x32xf32, #tpu.memory_space<vmem>>, vector<1x32xf32>
    %5 = vector.broadcast %4 : vector<1x32xf32> to vector<16x32xf32>
    %6 = arith.addf %3, %5 : vector<16x32xf32>
    %7 = math.tanh %6 : vector<16x32xf32>
    %8 = arith.truncf %7 : vector<16x32xf32> to vector<16x32xbf16>
    %c0_5 = arith.constant 0 : index
    %c0_6 = arith.constant 0 : index
    %9 = vector.load %arg4[%c0_5, %c0_6] : memref<32x128xbf16, #tpu.memory_space<vmem>>, vector<32x128xbf16>
    %cst_7 = arith.constant dense<0.000000e+00> : vector<16x128xf32>
    %10 = tpu.matmul %8, %9, %cst_7 {dimension_numbers = #tpu.dot_dimension_numbers<[1], [0], [0], [1], [0, 0, 1, 1], [], []>} : vector<16x32xbf16>, vector<32x128xbf16>, vector<16x128xf32> -> vector<16x128xf32>
    %c0_8 = arith.constant 0 : index
    %c0_9 = arith.constant 0 : index
    %11 = vector.load %arg5[%c0_8, %c0_9] : memref<1x128xf32, #tpu.memory_space<vmem>>, vector<1x128xf32>
    %12 = vector.broadcast %11 : vector<1x128xf32> to vector<16x128xf32>
    %13 = arith.addf %10, %12 : vector<16x128xf32>
    %14 = arith.truncf %13 : vector<16x128xf32> to vector<16x128xbf16>
    %c0_10 = arith.constant 0 : index
    %c0_11 = arith.constant 0 : index
    %15 = vector.load %arg6[%c0_10, %c0_11] : memref<16x128xbf16, #tpu.memory_space<vmem>>, vector<16x128xbf16>
    tpu.vector_store %arg6[%c0_10, %c0_11], %14 {strides = array<i32>} : memref<16x128xbf16, #tpu.memory_space<vmem>>, vector<16x128xbf16>,
    return
  }
  func.func @transform_0(%arg0: i32) -> (i32, i32) {
    %c0_i32 = arith.constant 0 : i32
    %c0_i32_0 = arith.constant 0 : i32
    return %arg0, %c0_i32 : i32, i32
  }
  func.func @transform_1(%arg0: i32) -> (i32, i32) {
    %c0_i32 = arith.constant 0 : i32
    %c0_i32_0 = arith.constant 0 : i32
    %c0_i32_1 = arith.constant 0 : i32
    return %c0_i32, %c0_i32_0 : i32, i32
  }
  func.func @transform_2(%arg0: i32) -> (i32, i32) {
    %c0_i32 = arith.constant 0 : i32
    %c0_i32_0 = arith.constant 0 : i32
    %c0_i32_1 = arith.constant 0 : i32
    return %c0_i32, %c0_i32_0 : i32, i32
  }
  func.func @transform_3(%arg0: i32) -> (i32, i32) {
    %c0_i32 = arith.constant 0 : i32
    %c0_i32_0 = arith.constant 0 : i32
    %c0_i32_1 = arith.constant 0 : i32
    return %c0_i32, %c0_i32_0 : i32, i32
  }
  func.func @transform_4(%arg0: i32) -> (i32, i32) {
    %c0_i32 = arith.constant 0 : i32
    %c0_i32_0 = arith.constant 0 : i32
    %c0_i32_1 = arith.constant 0 : i32
    return %c0_i32, %c0_i32_0 : i32, i32
  }
  func.func @transform_5(%arg0: i32) -> (i32, i32) {
    %c0_i32 = arith.constant 0 : i32
    %c0_i32_0 = arith.constant 0 : i32
    return %arg0, %c0_i32 : i32, i32
  }
}

</mosaic_0001>

<llo_original>
// kernel: tpu_custom_call.1
$region0: #{tpu_custom_call.1}
  #allocation0 [shape = 'u32[]', space=smem, size = 0x4, offset = 0x4, fixed_abs, tag = 'smem constant byte address 0x4 - core index']
  #allocation1 [shape = 'u32[144,128]{1,0:T(1,128)}', space=vmem, size = 0x12000, scoped, tag = 'internal scratch']
  %s0 = inlined_call_operand.hbm [shape: f32[16,32], index: 0, kind: input, shape index: {}]
  %s1 = inlined_call_operand.hbm [shape: bf16[32,32], index: 1, kind: input, shape index: {}]
  %s2 = inlined_call_operand.vmem [shape: f32[1,32], index: 2, kind: input, shape index: {}]
  %s3 = inlined_call_operand.hbm [shape: bf16[32,128], index: 3, kind: input, shape index: {}]
  %s4 = inlined_call_operand.vmem [shape: f32[1,128], index: 4, kind: input, shape index: {}]
  %s5 = inlined_call_operand.hbm [shape: bf16[16,128], index: 5, kind: output, shape index: {}]
  %s6 = sld [smem:[#allocation0]]
  $region42: #{tpu_custom_call.1} parent=0
    _
  %s8 = ssub.s32 1, %s6
  %s9 = scalar_select 0, %s8, %s6
  $region1: #{tpu_custom_call.1} parent=0
    #allocation2 [shape = 'u8[8192]{0}', space=vmem, size = 0x2000, scoped, tag = 'input window, operand 0, single buffered']
    #allocation3 [shape = 's32[1]{0}', space=sflag, size = 0x4, scoped, tag = 'scoped memory for tpu_custom_call.1']
    #allocation4 [shape = 's32[1]{0}', space=sflag, size = 0x4, scoped, tag = 'scoped memory for tpu_custom_call.1']
    #allocation5 [shape = 'u8[8192]{0}', space=vmem, size = 0x2000, scoped, tag = 'input window, operand 1, single buffered']
    #allocation6 [shape = 's32[1]{0}', space=sflag, size = 0x4, scoped, tag = 'scoped memory for tpu_custom_call.1']
    #allocation7 [shape = 'u8[8192]{0}', space=vmem, size = 0x2000, scoped, tag = 'input window, operand 3, single buffered']
    #allocation8 [shape = 'u8[4096]{0}', space=vmem, size = 0x1000, scoped, tag = 'output window, operand 0, single buffered']
    %10 = vsyncpa [#allocation3], 0
    %11 = vsyncpa [#allocation6], 0
    %12 = vsyncpa [#allocation4], 0
    // Predicated region
    $region2: #{tpu_custom_call.1} parent=1 // pred_check
      _
    $region3: #{tpu_custom_call.1} parent=1 // pred_check_branch
      %14 = sbr.rel (0) target = $region5
    $region4: #{tpu_custom_call.1} parent=1 // pred_region
      %s16 = ssub.s32 256, 256
      %17 = vsyncadd [#allocation3], %s16
      %s18 = sshll.u32 [#allocation2], 4
      %s19 = int_to_ptr.vmem [resolvable:$true] %s18
      %24 = dma.hbm_to_vmem [thread:$0]  %s0, 256, %s19, [#allocation3], 128, 128, 8
    $region5: #{tpu_custom_call.1} parent=1 // pred_fallthru
      _
    // Predicated region
    $region6: #{tpu_custom_call.1} parent=1 // pred_check
      _
    $region7: #{tpu_custom_call.1} parent=1 // pred_check_branch
      %26 = sbr.rel (0) target = $region9
    $region8: #{tpu_custom_call.1} parent=1 // pred_region
      %s28 = ssub.s32 256, 256
      %29 = vsyncadd [#allocation6], %s28
      %s30 = sshll.u32 [#allocation5], 4
      %s31 = int_to_ptr.vmem [resolvable:$true] %s30
      %36 = dma.hbm_to_vmem [thread:$0]  %s1, 256, %s31, [#allocation6], 64, 64, 4
    $region9: #{tpu_custom_call.1} parent=1 // pred_fallthru
      _
    // Predicated region
    $region10: #{tpu_custom_call.1} parent=1 // pred_check
      _
    $region11: #{tpu_custom_call.1} parent=1 // pred_check_branch
      %38 = sbr.rel (0) target = $region13
    $region12: #{tpu_custom_call.1} parent=1 // pred_region
      _
    $region13: #{tpu_custom_call.1} parent=1 // pred_fallthru
      _
    // Predicated region
    $region14: #{tpu_custom_call.1} parent=1 // pred_check
      _
    $region15: #{tpu_custom_call.1} parent=1 // pred_check_branch
      %40 = sbr.rel (0) target = $region17
    $region16: #{tpu_custom_call.1} parent=1 // pred_region
      %s42 = ssub.s32 256, 256
      %43 = vsyncadd [#allocation6], %s42
      %s44 = sshll.u32 [#allocation7], 4
      %s45 = int_to_ptr.vmem [resolvable:$true] %s44
      %50 = dma.hbm_to_vmem [thread:$0]  %s3, 256, %s45, [#allocation6], 64, 64, 4
    $region17: #{tpu_custom_call.1} parent=1 // pred_fallthru
      _
    // Predicated region
    $region18: #{tpu_custom_call.1} parent=1 // pred_check
      _
    $region19: #{tpu_custom_call.1} parent=1 // pred_check_branch
      %52 = sbr.rel (0) target = $region21
    $region20: #{tpu_custom_call.1} parent=1 // pred_region
      _
    $region21: #{tpu_custom_call.1} parent=1 // pred_fallthru
      _
    // Predicated region
    $region22: #{tpu_custom_call.1} parent=1 // pred_check
      _
    $region23: #{tpu_custom_call.1} parent=1 // pred_check_branch
      %54 = sbr.rel (0) target = $region25
    $region24: #{tpu_custom_call.1} parent=1 // pred_region
      %55 = dma.done [#allocation3], 256
    $region25: #{tpu_custom_call.1} parent=1 // pred_fallthru
      _
    // Predicated region
    $region26: #{tpu_custom_call.1} parent=1 // pred_check
      _
    $region27: #{tpu_custom_call.1} parent=1 // pred_check_branch
      %57 = sbr.rel (0) target = $region29
    $region28: #{tpu_custom_call.1} parent=1 // pred_region
      %58 = dma.done [#allocation6], 256
    $region29: #{tpu_custom_call.1} parent=1 // pred_fallthru
      _
    // Predicated region
    $region30: #{tpu_custom_call.1} parent=1 // pred_check
      _
    $region31: #{tpu_custom_call.1} parent=1 // pred_check_branch
      %60 = sbr.rel (0) target = $region33
    $region32: #{tpu_custom_call.1} parent=1 // pred_region
      %61 = dma.done [#allocation6], 256
    $region33: #{tpu_custom_call.1} parent=1 // pred_fallthru
      _
    %v63 = vld [vmem:[#allocation2] sm:$0xff]
    %v64 = vld [vmem:[#allocation2 + $0x8] sm:$0xff]
    %v65 = vpack.c.bf16 %v64, %v63
    %v66 = vld [vmem:[#allocation5] sm:$0xf]
    %v67 = vld [vmem:[#allocation5 + $0x4] sm:$0xf]
    %v68 = vld [vmem:[#allocation5 + $0x8] sm:$0xf]
    %v69 = vld [vmem:[#allocation5 + $0xc] sm:$0xf]
    %v70 = vld [vmem:[%s2] sm:$0x1]
    %v72 = vlaneseq
    %v73 = vshrl.u32 %v72, 7
    %v74 = vsub.s32 0, %v73
    %v75 = vrot.slane %v70, %v74
    %v81 = vunpack.c.l.b16 %v66
    %v82 = vunpack.c.l.b16 %v67
    %v83 = vunpack.c.l.b16 %v68
    %v84 = vunpack.c.l.b16 %v69
    %v85 = vpack.c.b16 %v82, %v81
    %v86 = vpack.c.b16 %v84, %v83
    %vm89 = vcmask 261120
    %v91 = vsel %vm89, %v65, 0
    %93 = vmatprep.subr.bf16.mxu0 0
    %94 = vmatpush1.bf16.msra.mxu0 %v85
    %95 = vmatprep.subr.bf16.mxu0 0
    %96 = vmatpush1.bf16.msra.mxu0 %v86
    %97 = vmatprep.subr.bf16.mxu0 0
    %98 = vmatpush1.bf16.msra.mxu0 0
    %99 = vmatprep.subr.bf16.mxu0 0
    %100 = vmatpush1.bf16.msra.mxu0 0
    %101 = vmatprep.subr.bf16.mxu0 0
    %102 = vmatpush1.bf16.msra.mxu0 0
    %103 = vmatprep.subr.bf16.mxu0 0
    %104 = vmatpush1.bf16.msra.mxu0 0
    %105 = vmatprep.subr.bf16.mxu0 0
    %106 = vmatpush1.bf16.msra.mxu0 0
    %107 = vmatprep.subr.bf16.mxu0 0
    %108 = vmatpush1.bf16.msra.mxu0 0
    %109 = vmatprep.subr.bf16.mxu0 0
    %110 = vmatpush1.bf16.msra.mxu0 0
    %111 = vmatprep.subr.bf16.mxu0 0
    %112 = vmatpush1.bf16.msra.mxu0 0
    %113 = vmatprep.subr.bf16.mxu0 0
    %114 = vmatpush1.bf16.msra.mxu0 0
    %115 = vmatprep.subr.bf16.mxu0 0
    %116 = vmatpush1.bf16.msra.mxu0 0
    %117 = vmatprep.subr.bf16.mxu0 0
    %118 = vmatpush1.bf16.msra.mxu0 0
    %119 = vmatprep.subr.bf16.mxu0 0
    %120 = vmatpush1.bf16.msra.mxu0 0
    %121 = vmatprep.subr.bf16.mxu0 0
    %122 = vmatpush1.bf16.msra.mxu0 0
    %123 = vmatprep.subr.bf16.mxu0 0
    %124 = vmatpush1.bf16.msra.mxu0 0
    %125 = vmatprep.mubr.bf16.mxu0 0
    %126 = vmatmul.mubr.bf16.gmra.mrb[0].mxu0 %v91
    %v127 = vpop.f32.mrb[0].mxu0
    %v128 = vadd.f32 %v75, %v127
    %v129 = vpop.f32.mrb[0].mxu0
    %v130 = vpop.f32.mrb[0].mxu0
    %v131 = vadd.f32 %v75, %v130
    %v132 = vpop.f32.mrb[0].mxu0
    %133 = vdwg.mxu0
    %v134 = vtanh.pop %v128
    %v135 = vtanh.pop %v131
    %v136 = vpack.c.bf16 %v135, %v134
    %v137 = vld [vmem:[#allocation7] sm:$0xf]
    %v138 = vld [vmem:[#allocation7 + $0x4] sm:$0xf]
    %v139 = vld [vmem:[#allocation7 + $0x8] sm:$0xf]
    %v140 = vld [vmem:[#allocation7 + $0xc] sm:$0xf]
    %v141 = vld [vmem:[%s4] sm:$0x1]
    %v143 = vlaneseq
    %v144 = vshrl.u32 %v143, 7
    %v145 = vsub.s32 0, %v144
    %v146 = vrot.slane %v141, %v145
    %v152 = vunpack.c.l.b16 %v137
    %v153 = vunpack.c.l.b16 %v138
    %v154 = vunpack.c.l.b16 %v139
    %v155 = vunpack.c.l.b16 %v140
    %v156 = vpack.c.b16 %v153, %v152
    %v157 = vpack.c.b16 %v155, %v154
    %v161 = vsel %vm89, %v136, 0
    %163 = vmatprep.subr.bf16.mxu0 0
    %164 = vmatpush1.bf16.msra.mxu0 %v156
    %165 = vmatprep.subr.bf16.mxu0 0
    %166 = vmatpush1.bf16.msra.mxu0 %v157
    %167 = vmatprep.subr.bf16.mxu0 0
    %168 = vmatpush1.bf16.msra.mxu0 0
    %169 = vmatprep.subr.bf16.mxu0 0
    %170 = vmatpush1.bf16.msra.mxu0 0
    %171 = vmatprep.subr.bf16.mxu0 0
    %172 = vmatpush1.bf16.msra.mxu0 0
    %173 = vmatprep.subr.bf16.mxu0 0
    %174 = vmatpush1.bf16.msra.mxu0 0
    %175 = vmatprep.subr.bf16.mxu0 0
    %176 = vmatpush1.bf16.msra.mxu0 0
    %177 = vmatprep.subr.bf16.mxu0 0
    %178 = vmatpush1.bf16.msra.mxu0 0
    %179 = vmatprep.subr.bf16.mxu0 0
    %180 = vmatpush1.bf16.msra.mxu0 0
    %181 = vmatprep.subr.bf16.mxu0 0
    %182 = vmatpush1.bf16.msra.mxu0 0
    %183 = vmatprep.subr.bf16.mxu0 0
    %184 = vmatpush1.bf16.msra.mxu0 0
    %185 = vmatprep.subr.bf16.mxu0 0
    %186 = vmatpush1.bf16.msra.mxu0 0
    %187 = vmatprep.subr.bf16.mxu0 0
    %188 = vmatpush1.bf16.msra.mxu0 0
    %189 = vmatprep.subr.bf16.mxu0 0
    %190 = vmatpush1.bf16.msra.mxu0 0
    %191 = vmatprep.subr.bf16.mxu0 0
    %192 = vmatpush1.bf16.msra.mxu0 0
    %193 = vmatprep.subr.bf16.mxu0 0
    %194 = vmatpush1.bf16.msra.mxu0 0
    %195 = vmatprep.mubr.bf16.mxu0 0
    %196 = vmatmul.mubr.bf16.gmra.mrb[0].mxu0 %v161
    %v197 = vpop.f32.mrb[0].mxu0
    %v198 = vadd.f32 %v146, %v197
    %v199 = vpop.f32.mrb[0].mxu0
    %v200 = vpop.f32.mrb[0].mxu0
    %v201 = vadd.f32 %v146, %v200
    %v202 = vpop.f32.mrb[0].mxu0
    %203 = vdwg.mxu0
    %v204 = vpack.c.bf16 %v201, %v198
    %v206 = vunpack.c.l.b16 %v204
    %v207 = vunpack.c.h.b16 %v204
    %v208 = vpack.c.b16 %v206, %v206
    %v209 = vpack.c.b16 %v207, %v207
    %212 = vst [vmem:[#allocation8] sm:$0xf] %v208
    %213 = vst [vmem:[#allocation8 + $0x4] sm:$0xf] %v209
    // Predicated region
    $region34: #{tpu_custom_call.1} parent=1 // pred_check
      _
    $region35: #{tpu_custom_call.1} parent=1 // pred_check_branch
      %215 = sbr.rel (0) target = $region37
    $region36: #{tpu_custom_call.1} parent=1 // pred_region
      %s217 = ssub.s32 128, 128
      %218 = vsyncadd [#allocation4], %s217
      %s219 = sshll.u32 [#allocation8], 4
      %s220 = int_to_ptr.vmem [resolvable:$true] %s219
      %225 = dma.vmem_to_hbm [thread:$0]  %s220, 128, %s5, [#allocation4], 64, 64, 4
    $region37: #{tpu_custom_call.1} parent=1 // pred_fallthru
      _
    // Predicated region
    $region38: #{tpu_custom_call.1} parent=1 // pred_check
      _
    $region39: #{tpu_custom_call.1} parent=1 // pred_check_branch
      %227 = sbr.rel (0) target = $region41
    $region40: #{tpu_custom_call.1} parent=1 // pred_region
      %228 = dma.done [#allocation4], 128
    $region41: #{tpu_custom_call.1} parent=1 // pred_fallthru
      _
    %229 = vsyncpa [#allocation3], 1
    %230 = vsyncpa [#allocation6], 1
    %231 = vsyncpa [#allocation4], 1

// kernel: tpu_custom_call.1
$region0: #{tpu_custom_call.1}
  #allocation0 [shape = 'u32[]', space=smem, size = 0x4, offset = 0x4, fixed_abs, tag = 'smem constant byte address 0x4 - core index']
  #allocation1 [shape = 'u32[144,128]{1,0:T(1,128)}', space=vmem, size = 0x12000, scoped, tag = 'internal scratch']
  %s0 = inlined_call_operand.hbm [shape: f32[16,32], index: 0, kind: input, shape index: {}]
  %s1 = inlined_call_operand.hbm [shape: bf16[32,32], index: 1, kind: input, shape index: {}]
  %s2 = inlined_call_operand.vmem [shape: f32[1,32], index: 2, kind: input, shape index: {}]
  %s3 = inlined_call_operand.hbm [shape: bf16[32,128], index: 3, kind: input, shape index: {}]
  %s4 = inlined_call_operand.vmem [shape: f32[1,128], index: 4, kind: input, shape index: {}]
  %s5 = inlined_call_operand.hbm [shape: bf16[16,128], index: 5, kind: output, shape index: {}]
  %s6 = sld [smem:[#allocation0]]
  $region42: #{tpu_custom_call.1} parent=0
    _
  %s8 = ssub.s32 1, %s6
  %s9 = scalar_select 0, %s8, %s6
  $region1: #{tpu_custom_call.1} parent=0
    #allocation2 [shape = 'u8[8192]{0}', space=vmem, size = 0x2000, scoped, tag = 'input window, operand 0, single buffered']
    #allocation3 [shape = 's32[1]{0}', space=sflag, size = 0x4, scoped, tag = 'scoped memory for tpu_custom_call.1']
    #allocation4 [shape = 's32[1]{0}', space=sflag, size = 0x4, scoped, tag = 'scoped memory for tpu_custom_call.1']
    #allocation5 [shape = 'u8[8192]{0}', space=vmem, size = 0x2000, scoped, tag = 'input window, operand 1, single buffered']
    #allocation6 [shape = 's32[1]{0}', space=sflag, size = 0x4, scoped, tag = 'scoped memory for tpu_custom_call.1']
    #allocation7 [shape = 'u8[8192]{0}', space=vmem, size = 0x2000, scoped, tag = 'input window, operand 3, single buffered']
    #allocation8 [shape = 'u8[4096]{0}', space=vmem, size = 0x1000, scoped, tag = 'output window, operand 0, single buffered']
    %10 = vsyncpa [#allocation3], 0
    %11 = vsyncpa [#allocation6], 0
    %12 = vsyncpa [#allocation4], 0
    // Predicated region
    $region2: #{tpu_custom_call.1} parent=1 // pred_check
      _
    $region3: #{tpu_custom_call.1} parent=1 // pred_check_branch
      %14 = sbr.rel (0) target = $region5
    $region4: #{tpu_custom_call.1} parent=1 // pred_region
      %s16 = ssub.s32 256, 256
      %17 = vsyncadd [#allocation3], %s16
      %s18 = sshll.u32 [#allocation2], 4
      %s19 = int_to_ptr.vmem [resolvable:$true] %s18
      %24 = dma.hbm_to_vmem [thread:$0]  %s0, 256, %s19, [#allocation3], 128, 128, 8
    $region5: #{tpu_custom_call.1} parent=1 // pred_fallthru
      _
    // Predicated region
    $region6: #{tpu_custom_call.1} parent=1 // pred_check
      _
    $region7: #{tpu_custom_call.1} parent=1 // pred_check_branch
      %26 = sbr.rel (0) target = $region9
    $region8: #{tpu_custom_call.1} parent=1 // pred_region
      %s28 = ssub.s32 256, 256
      %29 = vsyncadd [#allocation6], %s28
      %s30 = sshll.u32 [#allocation5], 4
      %s31 = int_to_ptr.vmem [resolvable:$true] %s30
      %36 = dma.hbm_to_vmem [thread:$0]  %s1, 256, %s31, [#allocation6], 64, 64, 4
    $region9: #{tpu_custom_call.1} parent=1 // pred_fallthru
      _
    // Predicated region
    $region10: #{tpu_custom_call.1} parent=1 // pred_check
      _
    $region11: #{tpu_custom_call.1} parent=1 // pred_check_branch
      %38 = sbr.rel (0) target = $region13
    $region12: #{tpu_custom_call.1} parent=1 // pred_region
      _
    $region13: #{tpu_custom_call.1} parent=1 // pred_fallthru
      _
    // Predicated region
    $region14: #{tpu_custom_call.1} parent=1 // pred_check
      _
    $region15: #{tpu_custom_call.1} parent=1 // pred_check_branch
      %40 = sbr.rel (0) target = $region17
    $region16: #{tpu_custom_call.1} parent=1 // pred_region
      %s42 = ssub.s32 256, 256
      %43 = vsyncadd [#allocation6], %s42
      %s44 = sshll.u32 [#allocation7], 4
      %s45 = int_to_ptr.vmem [resolvable:$true] %s44
      %50 = dma.hbm_to_vmem [thread:$0]  %s3, 256, %s45, [#allocation6], 64, 64, 4
    $region17: #{tpu_custom_call.1} parent=1 // pred_fallthru
      _
    // Predicated region
    $region18: #{tpu_custom_call.1} parent=1 // pred_check
      _
    $region19: #{tpu_custom_call.1} parent=1 // pred_check_branch
      %52 = sbr.rel (0) target = $region21
    $region20: #{tpu_custom_call.1} parent=1 // pred_region
      _
    $region21: #{tpu_custom_call.1} parent=1 // pred_fallthru
      _
    // Predicated region
    $region22: #{tpu_custom_call.1} parent=1 // pred_check
      _
    $region23: #{tpu_custom_call.1} parent=1 // pred_check_branch
      %54 = sbr.rel (0) target = $region25
    $region24: #{tpu_custom_call.1} parent=1 // pred_region
      %55 = dma.done [#allocation3], 256
    $region25: #{tpu_custom_call.1} parent=1 // pred_fallthru
      _
    // Predicated region
    $region26: #{tpu_custom_call.1} parent=1 // pred_check
      _
    $region27: #{tpu_custom_call.1} parent=1 // pred_check_branch
      %57 = sbr.rel (0) target = $region29
    $region28: #{tpu_custom_call.1} parent=1 // pred_region
      %58 = dma.done [#allocation6], 256
    $region29: #{tpu_custom_call.1} parent=1 // pred_fallthru
      _
    // Predicated region
    $region30: #{tpu_custom_call.1} parent=1 // pred_check
      _
    $region31: #{tpu_custom_call.1} parent=1 // pred_check_branch
      %60 = sbr.rel (0) target = $region33
    $region32: #{tpu_custom_call.1} parent=1 // pred_region
      %61 = dma.done [#allocation6], 256
    $region33: #{tpu_custom_call.1} parent=1 // pred_fallthru
      _
    %v63 = vld [vmem:[#allocation2] sm:$0xff]
    %v64 = vld [vmem:[#allocation2 + $0x8] sm:$0xff]
    %v65 = vpack.c.bf16 %v64, %v63
    %v66 = vld [vmem:[#allocation5] sm:$0xf]
    %v67 = vld [vmem:[#allocation5 + $0x4] sm:$0xf]
    %v68 = vld [vmem:[#allocation5 + $0x8] sm:$0xf]
    %v69 = vld [vmem:[#allocation5 + $0xc] sm:$0xf]
    %v70 = vld [vmem:[%s2] sm:$0x1]
    %v72 = vlaneseq
    %v73 = vshrl.u32 %v72, 7
    %v74 = vsub.s32 0, %v73
    %v75 = vrot.slane %v70, %v74
    %v81 = vunpack.c.l.b16 %v66
    %v82 = vunpack.c.l.b16 %v67
    %v83 = vunpack.c.l.b16 %v68
    %v84 = vunpack.c.l.b16 %v69
    %v85 = vpack.c.b16 %v82, %v81
    %v86 = vpack.c.b16 %v84, %v83
    %vm89 = vcmask 261120
    %v91 = vsel %vm89, %v65, 0
    %93 = vmatprep.subr.bf16.mxu0 0
    %94 = vmatpush1.bf16.msra.mxu0 %v85
    %95 = vmatprep.subr.bf16.mxu0 0
    %96 = vmatpush1.bf16.msra.mxu0 %v86
    %97 = vmatprep.subr.bf16.mxu0 0
    %98 = vmatpush1.bf16.msra.mxu0 0
    %99 = vmatprep.subr.bf16.mxu0 0
    %100 = vmatpush1.bf16.msra.mxu0 0
    %101 = vmatprep.subr.bf16.mxu0 0
    %102 = vmatpush1.bf16.msra.mxu0 0
    %103 = vmatprep.subr.bf16.mxu0 0
    %104 = vmatpush1.bf16.msra.mxu0 0
    %105 = vmatprep.subr.bf16.mxu0 0
    %106 = vmatpush1.bf16.msra.mxu0 0
    %107 = vmatprep.subr.bf16.mxu0 0
    %108 = vmatpush1.bf16.msra.mxu0 0
    %109 = vmatprep.subr.bf16.mxu0 0
    %110 = vmatpush1.bf16.msra.mxu0 0
    %111 = vmatprep.subr.bf16.mxu0 0
    %112 = vmatpush1.bf16.msra.mxu0 0
    %113 = vmatprep.subr.bf16.mxu0 0
    %114 = vmatpush1.bf16.msra.mxu0 0
    %115 = vmatprep.subr.bf16.mxu0 0
    %116 = vmatpush1.bf16.msra.mxu0 0
    %117 = vmatprep.subr.bf16.mxu0 0
    %118 = vmatpush1.bf16.msra.mxu0 0
    %119 = vmatprep.subr.bf16.mxu0 0
    %120 = vmatpush1.bf16.msra.mxu0 0
    %121 = vmatprep.subr.bf16.mxu0 0
    %122 = vmatpush1.bf16.msra.mxu0 0
    %123 = vmatprep.subr.bf16.mxu0 0
    %124 = vmatpush1.bf16.msra.mxu0 0
    %125 = vmatprep.mubr.bf16.mxu0 0
    %126 = vmatmul.mubr.bf16.gmra.mrb[0].mxu0 %v91
    %v127 = vpop.f32.mrb[0].mxu0
    %v128 = vadd.f32 %v75, %v127
    %v129 = vpop.f32.mrb[0].mxu0
    %v130 = vpop.f32.mrb[0].mxu0
    %v131 = vadd.f32 %v75, %v130
    %v132 = vpop.f32.mrb[0].mxu0
    %133 = vdwg.mxu0
    %v134 = vtanh.pop %v128
    %v135 = vtanh.pop %v131
    %v136 = vpack.c.bf16 %v135, %v134
    %v137 = vld [vmem:[#allocation7] sm:$0xf]
    %v138 = vld [vmem:[#allocation7 + $0x4] sm:$0xf]
    %v139 = vld [vmem:[#allocation7 + $0x8] sm:$0xf]
    %v140 = vld [vmem:[#allocation7 + $0xc] sm:$0xf]
    %v141 = vld [vmem:[%s4] sm:$0x1]
    %v143 = vlaneseq
    %v144 = vshrl.u32 %v143, 7
    %v145 = vsub.s32 0, %v144
    %v146 = vrot.slane %v141, %v145
    %v152 = vunpack.c.l.b16 %v137
    %v153 = vunpack.c.l.b16 %v138
    %v154 = vunpack.c.l.b16 %v139
    %v155 = vunpack.c.l.b16 %v140
    %v156 = vpack.c.b16 %v153, %v152
    %v157 = vpack.c.b16 %v155, %v154
    %v161 = vsel %vm89, %v136, 0
    %163 = vmatprep.subr.bf16.mxu0 0
    %164 = vmatpush1.bf16.msra.mxu0 %v156
    %165 = vmatprep.subr.bf16.mxu0 0
    %166 = vmatpush1.bf16.msra.mxu0 %v157
    %167 = vmatprep.subr.bf16.mxu0 0
    %168 = vmatpush1.bf16.msra.mxu0 0
    %169 = vmatprep.subr.bf16.mxu0 0
    %170 = vmatpush1.bf16.msra.mxu0 0
    %171 = vmatprep.subr.bf16.mxu0 0
    %172 = vmatpush1.bf16.msra.mxu0 0
    %173 = vmatprep.subr.bf16.mxu0 0
    %174 = vmatpush1.bf16.msra.mxu0 0
    %175 = vmatprep.subr.bf16.mxu0 0
    %176 = vmatpush1.bf16.msra.mxu0 0
    %177 = vmatprep.subr.bf16.mxu0 0
    %178 = vmatpush1.bf16.msra.mxu0 0
    %179 = vmatprep.subr.bf16.mxu0 0
    %180 = vmatpush1.bf16.msra.mxu0 0
    %181 = vmatprep.subr.bf16.mxu0 0
    %182 = vmatpush1.bf16.msra.mxu0 0
    %183 = vmatprep.subr.bf16.mxu0 0
    %184 = vmatpush1.bf16.msra.mxu0 0
    %185 = vmatprep.subr.bf16.mxu0 0
    %186 = vmatpush1.bf16.msra.mxu0 0
    %187 = vmatprep.subr.bf16.mxu0 0
    %188 = vmatpush1.bf16.msra.mxu0 0
    %189 = vmatprep.subr.bf16.mxu0 0
    %190 = vmatpush1.bf16.msra.mxu0 0
    %191 = vmatprep.subr.bf16.mxu0 0
    %192 = vmatpush1.bf16.msra.mxu0 0
    %193 = vmatprep.subr.bf16.mxu0 0
    %194 = vmatpush1.bf16.msra.mxu0 0
    %195 = vmatprep.mubr.bf16.mxu0 0
    %196 = vmatmul.mubr.bf16.gmra.mrb[0].mxu0 %v161
    %v197 = vpop.f32.mrb[0].mxu0
    %v198 = vadd.f32 %v146, %v197
    %v199 = vpop.f32.mrb[0].mxu0
    %v200 = vpop.f32.mrb[0].mxu0
    %v201 = vadd.f32 %v146, %v200
    %v202 = vpop.f32.mrb[0].mxu0
    %203 = vdwg.mxu0
    %v204 = vpack.c.bf16 %v201, %v198
    %v206 = vunpack.c.l.b16 %v204
    %v207 = vunpack.c.h.b16 %v204
    %v208 = vpack.c.b16 %v206, %v206
    %v209 = vpack.c.b16 %v207, %v207
    %212 = vst [vmem:[#allocation8] sm:$0xf] %v208
    %213 = vst [vmem:[#allocation8 + $0x4] sm:$0xf] %v209
    // Predicated region
    $region34: #{tpu_custom_call.1} parent=1 // pred_check
      _
    $region35: #{tpu_custom_call.1} parent=1 // pred_check_branch
      %215 = sbr.rel (0) target = $region37
    $region36: #{tpu_custom_call.1} parent=1 // pred_region
      %s217 = ssub.s32 128, 128
      %218 = vsyncadd [#allocation4], %s217
      %s219 = sshll.u32 [#allocation8], 4
      %s220 = int_to_ptr.vmem [resolvable:$true] %s219
      %225 = dma.vmem_to_hbm [thread:$0]  %s220, 128, %s5, [#allocation4], 64, 64, 4
    $region37: #{tpu_custom_call.1} parent=1 // pred_fallthru
      _
    // Predicated region
    $region38: #{tpu_custom_call.1} parent=1 // pred_check
      _
    $region39: #{tpu_custom_call.1} parent=1 // pred_check_branch
      %227 = sbr.rel (0) target = $region41
    $region40: #{tpu_custom_call.1} parent=1 // pred_region
      %228 = dma.done [#allocation4], 128
    $region41: #{tpu_custom_call.1} parent=1 // pred_fallthru
      _
    %229 = vsyncpa [#allocation3], 1
    %230 = vsyncpa [#allocation6], 1
    %231 = vsyncpa [#allocation4], 1

</llo_original>
